<compile_context>
chip_gen: v6e
topology: v6e:2x2x1
jax: 0.10.0
libtpu: 0.0.40
codegen_flags: <defaults>
</compile_context>

<pallas_src>
import functools

import jax
import jax.numpy as jnp
import numpy as np
from jax import lax
from jax.experimental import pallas as pl
from jax.experimental.pallas import tpu as pltpu


def _round_up(x, m):
    return ((x + m - 1) // m) * m


def _tile_budget_bytes():
    # ~4 MiB per xs tile on v5e (16 MiB scoped-VMEM default, ~0.82 TB/s HBM),
    # ~8 MiB on newer generations (v6e/v7x) to amortize per-grid-step overhead.
    try:
        kind = jax.devices()[0].device_kind.lower()
    except Exception:
        kind = ""
    if "v5" in kind:
        return 4 * 1024 * 1024
    return 8 * 1024 * 1024


def _attn_pool_kernel(n_linears, n_rows, tile_n, tiles_per_chunk, needs_mask,
                      *refs):
    """refs = (x, w0, b0, ..., w_{L-1}, b_{L-1},
               acc_out, m_out, l_out, acc_sc, m_sc, l_sc)."""
    x_ref = refs[0]
    param_refs = refs[1:1 + 2 * n_linears]
    acc_out, m_out, l_out = refs[1 + 2 * n_linears:4 + 2 * n_linears]
    acc_sc, m_sc, l_sc = refs[4 + 2 * n_linears:]

    c = pl.program_id(0)          # chunk (maps to a TensorCore on 2-TC chips)
    i = pl.program_id(1)          # tile within the chunk
    n_inner = pl.num_programs(1)

    @pl.when(i == 0)
    def _init():
        m_sc[...] = jnp.full_like(m_sc, -jnp.inf)
        l_sc[...] = jnp.zeros_like(l_sc)
        acc_sc[...] = jnp.zeros_like(acc_sc)

    x = x_ref[...]                                     # (TN, D), native dtype

    valid = None
    if needs_mask:
        tile_idx = c * tiles_per_chunk + i             # nominal (unclamped)
        row = tile_idx * tile_n + lax.broadcasted_iota(
            jnp.int32, (x.shape[0], 1), 0)
        valid = row < n_rows                           # (TN, 1)
        # Zero out-of-range rows: exp(-inf)=0 alone does not neutralize
        # undefined NaN/Inf data in the weighted-sum contraction (0*NaN=NaN).
        x = jnp.where(valid, x, jnp.zeros_like(x))

    # --- tiny MLP producing per-row logits (f32 accumulation) --------------
    h = x
    for li in range(n_linears):
        w = param_refs[2 * li][...]                          # (in, out), xs dtype
        b = param_refs[2 * li + 1][...].astype(jnp.float32)  # (1, out), f32
        h = jnp.dot(h.astype(w.dtype), w,
                    preferred_element_type=jnp.float32) + b
        if li < n_linears - 1:
            h = jax.nn.sigmoid(h)
    # h: (TN, 1) f32 logits
    if needs_mask:
        h = jnp.where(valid, h, -jnp.inf)

    # --- online softmax over the sequence axis ------------------------------
    m_prev = m_sc[...]                                 # (1, 1)
    m_new = jnp.maximum(m_prev, jnp.max(h, axis=0, keepdims=True))
    # Guard a fully-masked prefix (m_new == -inf): (-inf) - (-inf) = NaN.
    m_safe = jnp.where(m_new == -jnp.inf, jnp.zeros_like(m_new), m_new)
    alpha = jnp.exp(m_prev - m_safe)                   # (1, 1)
    p = jnp.exp(h - m_safe)                            # (TN, 1)
    l_sc[...] = alpha * l_sc[...] + jnp.sum(p, axis=0, keepdims=True)
    m_sc[...] = m_new

    # Weighted partial sum on the MXU: (1, TN) x (TN, D) -> (1, D).
    partial = lax.dot_general(
        p.astype(x.dtype), x,
        dimension_numbers=(((0,), (0,)), ((), ())),
        preferred_element_type=jnp.float32)
    acc_sc[...] = alpha * acc_sc[...] + partial

    @pl.when(i == n_inner - 1)
    def _finalize():
        acc_out[...] = acc_sc[...][None]               # (1, 1, D)
        m_out[...] = m_sc[...][None]                   # (1, 1, 1)
        l_out[...] = l_sc[...][None]                   # (1, 1, 1)


def attention_pooler(xs, weights, biases, *, block_n=65536):
    """xs: (N, D). weights[i]: (in_i, out_i) (transposed from torch's (out, in)).
    biases[i]: (1, out_i). Returns the pooled vector of shape (D,) in f32."""
    N, D = xs.shape
    n_linears = len(weights)
    itemsize = xs.dtype.itemsize

    # Weights in xs dtype (bf16 xs -> bf16 MXU path); biases stay f32.
    weights = [w.astype(xs.dtype) for w in weights]
    biases = [b.astype(jnp.float32) for b in biases]

    # Sequence tile: dtype-dependent sublane multiple, generation-aware budget.
    sublane = max(8, 32 // itemsize)            # f32: 8, bf16: 16, int8: 32
    budget_rows = max(sublane, _tile_budget_bytes() // max(1, D * itemsize))
    tn = min(block_n, budget_rows, _round_up(N, sublane))
    tn = max(sublane, (tn // sublane) * sublane)
    n_tiles = (N + tn - 1) // tn

    # Split the N axis into 2 chunks (leading "parallel" grid axis) so both
    # TensorCores of a v7x stream xs; a 1-TC chip just runs them in sequence.
    n_split = 2 if n_tiles >= 2 else 1
    tpc = (n_tiles + n_split - 1) // n_split    # tiles per chunk
    needs_mask = (N % tn != 0) or (n_split * tpc != n_tiles)

    if n_split * tpc != n_tiles:
        # The grid has tiles past the data; clamp their DMA to the last real
        # tile (their rows are masked in-kernel via the nominal row index).
        def x_index_map(c, i):
            return (jnp.minimum(c * tpc + i, n_tiles - 1), 0)
    else:
        def x_index_map(c, i):
            return (c * tpc + i, 0)

    inputs = [xs]
    for w, b in zip(weights, biases):
        inputs += [w, b]

    in_specs = [pl.BlockSpec((tn, D), x_index_map)]
    for a in inputs[1:]:  # weights / biases: whole array, constant index_map
        in_specs.append(
            pl.BlockSpec(a.shape, (lambda nd: (lambda c, i: (0,) * nd))(a.ndim)))
    out_specs = [
        pl.BlockSpec((1, 1, D), lambda c, i: (c, 0, 0)),
        pl.BlockSpec((1, 1, 1), lambda c, i: (c, 0, 0)),
        pl.BlockSpec((1, 1, 1), lambda c, i: (c, 0, 0)),
    ]
    out_shape = (
        jax.ShapeDtypeStruct((n_split, 1, D), jnp.float32),   # acc partials
        jax.ShapeDtypeStruct((n_split, 1, 1), jnp.float32),   # running max m
        jax.ShapeDtypeStruct((n_split, 1, 1), jnp.float32),   # softmax denom l
    )

    tile_bytes = tn * D * itemsize
    vmem_limit = int(4 * tile_bytes + 8 * 1024 * 1024)

    # Advisory cost estimate for XLA's scheduler.
    mlp_flops = 2 * N * sum(int(w.shape[0]) * int(w.shape[1]) for w in weights)
    flops = mlp_flops + 2 * N * D
    transcendentals = N * (sum(int(w.shape[1]) for w in weights[:-1]) + 1)
    bytes_accessed = (
        N * D * itemsize
        + sum(int(np.prod(w.shape)) * w.dtype.itemsize for w in weights)
        + sum(int(np.prod(b.shape)) * b.dtype.itemsize for b in biases)
        + n_split * (D + 2) * 4)

    acc, m, l = pl.pallas_call(
        functools.partial(_attn_pool_kernel, n_linears, N, tn, tpc, needs_mask),
        out_shape=out_shape,
        grid_spec=pltpu.PrefetchScalarGridSpec(
            num_scalar_prefetch=0,
            grid=(n_split, tpc),
            in_specs=in_specs,
            out_specs=out_specs,
            scratch_shapes=[
                pltpu.VMEM((1, D), jnp.float32),   # weighted-sum accumulator
                pltpu.VMEM((1, 1), jnp.float32),   # running softmax max m
                pltpu.VMEM((1, 1), jnp.float32),   # running softmax denom l
            ]),
        compiler_params=pltpu.CompilerParams(
            dimension_semantics=("parallel", "arbitrary"),
            vmem_limit_bytes=vmem_limit),
        cost_estimate=pl.CostEstimate(
            flops=int(flops),
            transcendentals=int(transcendentals),
            bytes_accessed=int(bytes_accessed)),
    )(*inputs)

    # O(D) merge of the per-chunk online-softmax partials (exact division).
    acc = acc[:, 0, :].astype(jnp.float32)     # (n_split, D)
    m = m[:, 0, 0]                             # (n_split,)
    l = l[:, 0, 0]                             # (n_split,)
    m_g = jnp.max(m)
    a = jnp.exp(m - m_g)                       # (n_split,)
    num = jnp.sum(acc * a[:, None], axis=0)    # (D,)
    den = jnp.sum(l * a)
    return num / den                           # (D,) f32


def _reference(xs, weights, biases):
    h = xs.astype(jnp.float32)
    n = len(weights)
    for i, (w, b) in enumerate(zip(weights, biases)):
        h = h @ w + b
        if i < n - 1:
            h = jax.nn.sigmoid(h)
    scores = jax.nn.softmax(h, axis=0)
    return jnp.sum(scores * xs.astype(jnp.float32), axis=0)


if __name__ == "__main__":
    dims = (32, 16)   # AttentionPooler(dims): Linear(32,16)+Sigmoid, Linear(16,1)
    key = jax.random.PRNGKey(0)

    # Deterministic synthetic parameters (PyTorch-style uniform +-1/sqrt(fan_in)).
    layer_dims = list(zip(dims[:-1], dims[1:])) + [(dims[-1], 1)]
    weights, biases = [], []
    for (fan_in, fan_out) in layer_dims:
        key, kw, kb = jax.random.split(key, 3)
        bound = 1.0 / np.sqrt(fan_in)
        weights.append(jax.random.uniform(kw, (fan_in, fan_out), jnp.float32,
                                          -bound, bound))
        biases.append(jax.random.uniform(kb, (1, fan_out), jnp.float32,
                                         -bound, bound))

    # Case 1: N a tile multiple (single chunk, no masking path).
    key, kx = jax.random.split(key)
    xs = jax.random.normal(kx, (8, dims[0]), jnp.float32)
    out = jax.block_until_ready(attention_pooler(xs, weights, biases))
    ref = _reference(xs, weights, biases)
    assert out.shape == (dims[0],)
    assert np.allclose(np.asarray(out), np.asarray(ref), atol=1e-3, rtol=1e-3)

    # Case 2: ragged N with a forced small tile -> exercises the 2-chunk split,
    # partial-block masking and the clamped index_map.
    key, kx2 = jax.random.split(key)
    xs2 = jax.random.normal(kx2, (37, dims[0]), jnp.float32)
    out2 = jax.block_until_ready(
        attention_pooler(xs2, weights, biases, block_n=8))
    ref2 = _reference(xs2, weights, biases)
    assert out2.shape == (dims[0],)
    assert np.allclose(np.asarray(out2), np.asarray(ref2), atol=1e-3, rtol=1e-3)

    print("KERNEL_OK")
</pallas_src>

<mosaic_0001>
module attributes {stable_mosaic.version = 11 : i64} {
  func.func @_attn_pool_kernel(%arg0: i32, %arg1: i32, %arg2: memref<8x32xf32, #tpu.memory_space<vmem>>, %arg3: memref<32x16xf32, #tpu.memory_space<vmem>>, %arg4: memref<1x16xf32, #tpu.memory_space<vmem>>, %arg5: memref<16x1xf32, #tpu.memory_space<vmem>>, %arg6: memref<1x1xf32, #tpu.memory_space<vmem>>, %arg7: memref<1x1x32xf32, #tpu.memory_space<vmem>>, %arg8: memref<1x1x1xf32, #tpu.memory_space<vmem>>, %arg9: memref<1x1x1xf32, #tpu.memory_space<vmem>>, %arg10: memref<1x32xf32, #tpu.memory_space<vmem>>, %arg11: memref<1x1xf32, #tpu.memory_space<vmem>>, %arg12: memref<1x1xf32, #tpu.memory_space<vmem>>) attributes {dimension_semantics = [#tpu.dimension_semantics<parallel>, #tpu.dimension_semantics<arbitrary>], iteration_bounds = array<i64: 1, 1>, scalar_prefetch = 0 : i64, scratch_operands = 3 : i64, tpu.core_type = #tpu.core_type<tc>, window_params = [{transform_indices = @transform_0, window_bounds = array<i64: 8, 32>}, {pipeline_mode = #tpu.pipeline_mode<synchronous>, transform_indices = @transform_1, window_bounds = array<i64: 32, 16>}, {pipeline_mode = #tpu.pipeline_mode<synchronous>, transform_indices = @transform_2, window_bounds = array<i64: 1, 16>}, {pipeline_mode = #tpu.pipeline_mode<synchronous>, transform_indices = @transform_3, window_bounds = array<i64: 16, 1>}, {pipeline_mode = #tpu.pipeline_mode<synchronous>, transform_indices = @transform_4, window_bounds = array<i64: 1, 1>}, {transform_indices = @transform_5, window_bounds = array<i64: 1, 1, 32>}, {transform_indices = @transform_6, window_bounds = array<i64: 1, 1, 1>}, {transform_indices = @transform_7, window_bounds = array<i64: 1, 1, 1>}]} {
    %c0_i32 = arith.constant 0 : i32
    %0 = arith.cmpi eq, %arg1, %c0_i32 : i32
    %1 = arith.extui %0 : i1 to i32
    %c0_i32_0 = arith.constant 0 : i32
    %2 = arith.cmpi ne, %1, %c0_i32_0 : i32
    scf.if %2 {
      %cst_31 = arith.constant 0xFF800000 : f32
      %48 = vector.broadcast %cst_31 : f32 to vector<1x1xf32>
      %c0_32 = arith.constant 0 : index
      %c0_33 = arith.constant 0 : index
      %49 = vector.load %arg11[%c0_32, %c0_33] : memref<1x1xf32, #tpu.memory_space<vmem>>, vector<1x1xf32>
      tpu.vector_store %arg11[%c0_32, %c0_33], %48 {strides = array<i32>} : memref<1x1xf32, #tpu.memory_space<vmem>>, vector<1x1xf32>,
      %cst_34 = arith.constant 0.000000e+00 : f32
      %50 = vector.broadcast %cst_34 : f32 to vector<1x1xf32>
      %c0_35 = arith.constant 0 : index
      %c0_36 = arith.constant 0 : index
      %51 = vector.load %arg12[%c0_35, %c0_36] : memref<1x1xf32, #tpu.memory_space<vmem>>, vector<1x1xf32>
      tpu.vector_store %arg12[%c0_35, %c0_36], %50 {strides = array<i32>} : memref<1x1xf32, #tpu.memory_space<vmem>>, vector<1x1xf32>,
      %cst_37 = arith.constant 0.000000e+00 : f32
      %52 = vector.broadcast %cst_37 : f32 to vector<1x32xf32>
      %c0_38 = arith.constant 0 : index
      %c0_39 = arith.constant 0 : index
      %53 = vector.load %arg10[%c0_38, %c0_39] : memref<1x32xf32, #tpu.memory_space<vmem>>, vector<1x32xf32>
      tpu.vector_store %arg10[%c0_38, %c0_39], %52 {strides = array<i32>} : memref<1x32xf32, #tpu.memory_space<vmem>>, vector<1x32xf32>,
    } else {
    }
    %c0 = arith.constant 0 : index
    %c0_1 = arith.constant 0 : index
    %3 = vector.load %arg2[%c0, %c0_1] : memref<8x32xf32, #tpu.memory_space<vmem>>, vector<8x32xf32>
    %c0_2 = arith.constant 0 : index
    %c0_3 = arith.constant 0 : index
    %4 = vector.load %arg3[%c0_2, %c0_3] : memref<32x16xf32, #tpu.memory_space<vmem>>, vector<32x16xf32>
    %c0_4 = arith.constant 0 : index
    %c0_5 = arith.constant 0 : index
    %5 = vector.load %arg4[%c0_4, %c0_5] : memref<1x16xf32, #tpu.memory_space<vmem>>, vector<1x16xf32>
    %cst = arith.constant dense<0.000000e+00> : vector<8x16xf32>
    %6 = tpu.matmul %3, %4, %cst {dimension_numbers = #tpu.dot_dimension_numbers<[1], [0], [0], [1], [0, 0, 1, 1], [], []>} : vector<8x32xf32>, vector<32x16xf32>, vector<8x16xf32> -> vector<8x16xf32>
    %7 = vector.broadcast %5 : vector<1x16xf32> to vector<8x16xf32>
    %8 = arith.addf %6, %7 : vector<8x16xf32>
    %9 = arith.negf %8 : vector<8x16xf32>
    %10 = math.exp %9 : vector<8x16xf32>
    %cst_6 = arith.constant 1.000000e+00 : f32
    %11 = vector.broadcast %cst_6 : f32 to vector<8x16xf32>
    %12 = arith.addf %11, %10 : vector<8x16xf32>
    %13 = arith.divf %11, %12 : vector<8x16xf32>
    %c0_7 = arith.constant 0 : index
    %c0_8 = arith.constant 0 : index
    %14 = vector.load %arg5[%c0_7, %c0_8] : memref<16x1xf32, #tpu.memory_space<vmem>>, vector<16x1xf32>
    %c0_9 = arith.constant 0 : index
    %c0_10 = arith.constant 0 : index
    %15 = vector.load %arg6[%c0_9, %c0_10] : memref<1x1xf32, #tpu.memory_space<vmem>>, vector<1x1xf32>
    %cst_11 = arith.constant dense<0.000000e+00> : vector<8x1xf32>
    %16 = tpu.matmul %13, %14, %cst_11 {dimension_numbers = #tpu.dot_dimension_numbers<[1], [0], [0], [1], [0, 0, 1, 1], [], []>} : vector<8x16xf32>, vector<16x1xf32>, vector<8x1xf32> -> vector<8x1xf32>
    %17 = vector.broadcast %15 : vector<1x1xf32> to vector<8x1xf32>
    %18 = arith.addf %16, %17 : vector<8x1xf32>
    %c0_12 = arith.constant 0 : index
    %c0_13 = arith.constant 0 : index
    %19 = vector.load %arg11[%c0_12, %c0_13] : memref<1x1xf32, #tpu.memory_space<vmem>>, vector<1x1xf32>
    %cst_14 = arith.constant dense<0xFF800000> : vector<1xf32>
    %20 = vector.multi_reduction <maximumf>, %18, %cst_14 [0] : vector<8x1xf32> to vector<1xf32>
    %21 = vector.shape_cast %20 : vector<1xf32> to vector<1x1xf32>
    %22 = arith.maximumf %19, %21 : vector<1x1xf32>
    %cst_15 = arith.constant 0xFF800000 : f32
    %23 = vector.broadcast %cst_15 : f32 to vector<1x1xf32>
    %24 = arith.cmpf oeq, %22, %23 : vector<1x1xf32>
    %cst_16 = arith.constant 0.000000e+00 : f32
    %25 = vector.broadcast %cst_16 : f32 to vector<1x1xf32>
    %26 = arith.select %24, %25, %22 : vector<1x1xi1>, vector<1x1xf32>
    %27 = arith.subf %19, %26 : vector<1x1xf32>
    %28 = math.exp %27 : vector<1x1xf32>
    %29 = vector.broadcast %26 : vector<1x1xf32> to vector<8x1xf32>
    %30 = arith.subf %18, %29 : vector<8x1xf32>
    %31 = math.exp %30 : vector<8x1xf32>
    %c0_17 = arith.constant 0 : index
    %c0_18 = arith.constant 0 : index
    %32 = vector.load %arg12[%c0_17, %c0_18] : memref<1x1xf32, #tpu.memory_space<vmem>>, vector<1x1xf32>
    %33 = arith.mulf %28, %32 : vector<1x1xf32>
    %cst_19 = arith.constant dense<0.000000e+00> : vector<1xf32>
    %34 = vector.multi_reduction <add>, %31, %cst_19 [0] : vector<8x1xf32> to vector<1xf32>
    %35 = vector.shape_cast %34 : vector<1xf32> to vector<1x1xf32>
    %36 = arith.addf %33, %35 : vector<1x1xf32>
    %c0_20 = arith.constant 0 : index
    %c0_21 = arith.constant 0 : index
    %37 = vector.load %arg12[%c0_20, %c0_21] : memref<1x1xf32, #tpu.memory_space<vmem>>, vector<1x1xf32>
    tpu.vector_store %arg12[%c0_20, %c0_21], %36 {strides = array<i32>} : memref<1x1xf32, #tpu.memory_space<vmem>>, vector<1x1xf32>,
    %c0_22 = arith.constant 0 : index
    %c0_23 = arith.constant 0 : index
    %38 = vector.load %arg11[%c0_22, %c0_23] : memref<1x1xf32, #tpu.memory_space<vmem>>, vector<1x1xf32>
    tpu.vector_store %arg11[%c0_22, %c0_23], %22 {strides = array<i32>} : memref<1x1xf32, #tpu.memory_space<vmem>>, vector<1x1xf32>,
    %cst_24 = arith.constant dense<0.000000e+00> : vector<1x32xf32>
    %39 = tpu.matmul %31, %3, %cst_24 {dimension_numbers = #tpu.dot_dimension_numbers<[0], [0], [1], [1], [0, 1, 1, 1], [], []>} : vector<8x1xf32>, vector<8x32xf32>, vector<1x32xf32> -> vector<1x32xf32>
    %c0_25 = arith.constant 0 : index
    %c0_26 = arith.constant 0 : index
    %40 = vector.load %arg10[%c0_25, %c0_26] : memref<1x32xf32, #tpu.memory_space<vmem>>, vector<1x32xf32>
    %41 = vector.broadcast %28 : vector<1x1xf32> to vector<1x32xf32>
    %42 = arith.mulf %41, %40 : vector<1x32xf32>
    %43 = arith.addf %42, %39 : vector<1x32xf32>
    %c0_27 = arith.constant 0 : index
    %c0_28 = arith.constant 0 : index
    %44 = vector.load %arg10[%c0_27, %c0_28] : memref<1x32xf32, #tpu.memory_space<vmem>>, vector<1x32xf32>
    tpu.vector_store %arg10[%c0_27, %c0_28], %43 {strides = array<i32>} : memref<1x32xf32, #tpu.memory_space<vmem>>, vector<1x32xf32>,
    %c0_i32_29 = arith.constant 0 : i32
    %45 = arith.cmpi eq, %arg1, %c0_i32_29 : i32
    %46 = arith.extui %45 : i1 to i32
    %c0_i32_30 = arith.constant 0 : i32
    %47 = arith.cmpi ne, %46, %c0_i32_30 : i32
    scf.if %47 {
      %c0_31 = arith.constant 0 : index
      %c0_32 = arith.constant 0 : index
      %48 = vector.load %arg10[%c0_31, %c0_32] : memref<1x32xf32, #tpu.memory_space<vmem>>, vector<1x32xf32>
      %49 = vector.shape_cast %48 : vector<1x32xf32> to vector<1x1x32xf32>
      %c0_33 = arith.constant 0 : index
      %c0_34 = arith.constant 0 : index
      %c0_35 = arith.constant 0 : index
      %50 = vector.load %arg7[%c0_33, %c0_34, %c0_35] : memref<1x1x32xf32, #tpu.memory_space<vmem>>, vector<1x1x32xf32>
      tpu.vector_store %arg7[%c0_33, %c0_34, %c0_35], %49 {strides = array<i32>} : memref<1x1x32xf32, #tpu.memory_space<vmem>>, vector<1x1x32xf32>,
      %c0_36 = arith.constant 0 : index
      %c0_37 = arith.constant 0 : index
      %51 = vector.load %arg11[%c0_36, %c0_37] : memref<1x1xf32, #tpu.memory_space<vmem>>, vector<1x1xf32>
      %52 = vector.shape_cast %51 : vector<1x1xf32> to vector<1x1x1xf32>
      %c0_38 = arith.constant 0 : index
      %c0_39 = arith.constant 0 : index
      %c0_40 = arith.constant 0 : index
      %53 = vector.load %arg8[%c0_38, %c0_39, %c0_40] : memref<1x1x1xf32, #tpu.memory_space<vmem>>, vector<1x1x1xf32>
      tpu.vector_store %arg8[%c0_38, %c0_39, %c0_40], %52 {strides = array<i32>} : memref<1x1x1xf32, #tpu.memory_space<vmem>>, vector<1x1x1xf32>,
      %c0_41 = arith.constant 0 : index
      %c0_42 = arith.constant 0 : index
      %54 = vector.load %arg12[%c0_41, %c0_42] : memref<1x1xf32, #tpu.memory_space<vmem>>, vector<1x1xf32>
      %55 = vector.shape_cast %54 : vector<1x1xf32> to vector<1x1x1xf32>
      %c0_43 = arith.constant 0 : index
      %c0_44 = arith.constant 0 : index
      %c0_45 = arith.constant 0 : index
      %56 = vector.load %arg9[%c0_43, %c0_44, %c0_45] : memref<1x1x1xf32, #tpu.memory_space<vmem>>, vector<1x1x1xf32>
      tpu.vector_store %arg9[%c0_43, %c0_44, %c0_45], %55 {strides = array<i32>} : memref<1x1x1xf32, #tpu.memory_space<vmem>>, vector<1x1x1xf32>,
    } else {
    }
    return
  }
  func.func @transform_0(%arg0: i32, %arg1: i32) -> (i32, i32) {
    %c1_i32 = arith.constant 1 : i32
    %0 = arith.muli %arg0, %c1_i32 : i32
    %1 = arith.addi %0, %arg1 : i32
    %c0_i32 = arith.constant 0 : i32
    %c0_i32_0 = arith.constant 0 : i32
    return %1, %c0_i32 : i32, i32
  }
  func.func @transform_1(%arg0: i32, %arg1: i32) -> (i32, i32) {
    %c0_i32 = arith.constant 0 : i32
    %c0_i32_0 = arith.constant 0 : i32
    %c0_i32_1 = arith.constant 0 : i32
    return %c0_i32, %c0_i32_0 : i32, i32
  }
  func.func @transform_2(%arg0: i32, %arg1: i32) -> (i32, i32) {
    %c0_i32 = arith.constant 0 : i32
    %c0_i32_0 = arith.constant 0 : i32
    %c0_i32_1 = arith.constant 0 : i32
    return %c0_i32, %c0_i32_0 : i32, i32
  }
  func.func @transform_3(%arg0: i32, %arg1: i32) -> (i32, i32) {
    %c0_i32 = arith.constant 0 : i32
    %c0_i32_0 = arith.constant 0 : i32
    %c0_i32_1 = arith.constant 0 : i32
    return %c0_i32, %c0_i32_0 : i32, i32
  }
  func.func @transform_4(%arg0: i32, %arg1: i32) -> (i32, i32) {
    %c0_i32 = arith.constant 0 : i32
    %c0_i32_0 = arith.constant 0 : i32
    %c0_i32_1 = arith.constant 0 : i32
    return %c0_i32, %c0_i32_0 : i32, i32
  }
  func.func @transform_5(%arg0: i32, %arg1: i32) -> (i32, i32, i32) {
    %c0_i32 = arith.constant 0 : i32
    %c0_i32_0 = arith.constant 0 : i32
    %c0_i32_1 = arith.constant 0 : i32
    return %arg0, %c0_i32, %c0_i32_0 : i32, i32, i32
  }
  func.func @transform_6(%arg0: i32, %arg1: i32) -> (i32, i32, i32) {
    %c0_i32 = arith.constant 0 : i32
    %c0_i32_0 = arith.constant 0 : i32
    %c0_i32_1 = arith.constant 0 : i32
    return %arg0, %c0_i32, %c0_i32_0 : i32, i32, i32
  }
  func.func @transform_7(%arg0: i32, %arg1: i32) -> (i32, i32, i32) {
    %c0_i32 = arith.constant 0 : i32
    %c0_i32_0 = arith.constant 0 : i32
    %c0_i32_1 = arith.constant 0 : i32
    return %arg0, %c0_i32, %c0_i32_0 : i32, i32, i32
  }
}

</mosaic_0001>

<llo_original>
// kernel: tpu_custom_call.1
$region0: #{tpu_custom_call.1}
  #allocation0 [shape = 'u32[]', space=smem, size = 0x4, offset = 0x4, fixed_abs, tag = 'smem constant byte address 0x4 - core index']
  #allocation1 [shape = 'u32[144,128]{1,0:T(1,128)}', space=vmem, size = 0x12000, scoped, tag = 'internal scratch']
  #allocation2 [shape = 'f32[1,32]{1,0:T(1,128)}', space=vmem, size = 0x200, scoped, tag = 'scratch operand']
  #allocation3 [shape = 'f32[1,1]{1,0:T(1,128)}', space=vmem, size = 0x200, scoped, tag = 'scratch operand']
  #allocation4 [shape = 'f32[1,1]{1,0:T(1,128)}', space=vmem, size = 0x200, scoped, tag = 'scratch operand']
  #allocation5 [shape = 'f32[1,1]{1,0:T(1,128)S(1)}', space=vmem, size = 0x200, scoped, tag = 'scoped memory for tpu_custom_call.1']
  %s0 = inlined_call_operand.vmem [shape: f32[8,32], index: 0, kind: input, shape index: {}]
  %s1 = inlined_call_operand.vmem [shape: f32[32,16], index: 1, kind: input, shape index: {}]
  %s2 = inlined_call_operand.vmem [shape: f32[1,16], index: 2, kind: input, shape index: {}]
  %s3 = inlined_call_operand.vmem [shape: f32[16,1], index: 3, kind: input, shape index: {}]
  %s4 = inlined_call_operand.<no memory space> [shape: f32[1,1], index: 4, kind: input, shape index: {}]
  %s5 = inlined_call_operand.hbm [shape: f32[1,1,32], index: 5, kind: output, shape index: {0}]
  %s6 = inlined_call_operand.hbm [shape: f32[1,1,1], index: 6, kind: output, shape index: {1}]
  %s7 = inlined_call_operand.hbm [shape: f32[1,1,1], index: 7, kind: output, shape index: {2}]
  %8 = xla_tuple %s5, %s6, %s7
  %s9 = sld [smem:[#allocation0]]
  $region54: #{tpu_custom_call.1} parent=0
    _
  %s11 = ssub.s32 1, %s9
  %s12 = scalar_select 0, %s11, %s9
  %v13 = vstv %s4
  %14 = vst [vmem:[#allocation5] sm:$0x1] %v13
  $region1: #{tpu_custom_call.1} parent=0
    #allocation6 [shape = 'u8[512]{0}', space=vmem, size = 0x400, scoped, tag = 'output window, operand 0, single buffered']
    #allocation7 [shape = 's32[1]{0}', space=sflag, size = 0x4, scoped, tag = 'scoped memory for tpu_custom_call.1']
    #allocation8 [shape = 'u8[512]{0}', space=vmem, size = 0x400, scoped, tag = 'output window, operand 1, single buffered']
    #allocation9 [shape = 's32[1]{0}', space=sflag, size = 0x4, scoped, tag = 'scoped memory for tpu_custom_call.1']
    #allocation10 [shape = 'u8[512]{0}', space=vmem, size = 0x400, scoped, tag = 'output window, operand 2, single buffered']
    %15 = vsyncpa [#allocation7], 0
    %16 = vsyncpa [#allocation9], 0
    // Predicated region
    $region2: #{tpu_custom_call.1} parent=1 // pred_check
      _
    $region3: #{tpu_custom_call.1} parent=1 // pred_check_branch
      %18 = sbr.rel (0) target = $region5
    $region4: #{tpu_custom_call.1} parent=1 // pred_region
      %s19 = sadd.s32 0, 0
      %p20 = scmp.lt.s32.totalorder %s19, 0
      %s21 = scalar_select %p20, %s19, 0
      %s22 = smul.addr %s21, 8
      %s23 = scalar_lea.vmem %s0, %s22
      %s24 = sadd.s32 0, 0
    $region5: #{tpu_custom_call.1} parent=1 // pred_fallthru
      _
    // Predicated region
    $region6: #{tpu_custom_call.1} parent=1 // pred_check
      _
    $region7: #{tpu_custom_call.1} parent=1 // pred_check_branch
      %26 = sbr.rel (0) target = $region9
    $region8: #{tpu_custom_call.1} parent=1 // pred_region
      _
    $region9: #{tpu_custom_call.1} parent=1 // pred_fallthru
      _
    // Predicated region
    $region10: #{tpu_custom_call.1} parent=1 // pred_check
      _
    $region11: #{tpu_custom_call.1} parent=1 // pred_check_branch
      %28 = sbr.rel (0) target = $region13
    $region12: #{tpu_custom_call.1} parent=1 // pred_region
      _
    $region13: #{tpu_custom_call.1} parent=1 // pred_fallthru
      _
    // Predicated region
    $region14: #{tpu_custom_call.1} parent=1 // pred_check
      _
    $region15: #{tpu_custom_call.1} parent=1 // pred_check_branch
      %30 = sbr.rel (0) target = $region17
    $region16: #{tpu_custom_call.1} parent=1 // pred_region
      _
    $region17: #{tpu_custom_call.1} parent=1 // pred_fallthru
      _
    // Predicated region
    $region18: #{tpu_custom_call.1} parent=1 // pred_check
      _
    $region19: #{tpu_custom_call.1} parent=1 // pred_check_branch
      %32 = sbr.rel (0) target = $region21
    $region20: #{tpu_custom_call.1} parent=1 // pred_region
      _
    $region21: #{tpu_custom_call.1} parent=1 // pred_fallthru
      _
    %s33 = sadd.s32 0, 0
    %p34 = scmp.lt.s32.totalorder %s33, 0
    %s35 = scalar_select %p34, %s33, 0
    %s36 = smul.addr %s35, 8
    %s37 = scalar_lea.vmem %s0, %s36
    %s38 = sadd.s32 0, 0
    %p39 = scmp.lt.s32.totalorder %s38, 0
    %s40 = scalar_select %p39, %s38, 0
    %s41 = smul.addr %s40, 8
    %s42 = scalar_lea.vmem %s0, %s41
    %s43 = sadd.s32 0, 0
    %p44 = scmp.eq.s32.totalorder 0, 0
    // Predicated region
    $region22: #{tpu_custom_call.1} parent=1 // pred_check
      %p45 = pneg %p44
    $region23: #{tpu_custom_call.1} parent=1 // pred_check_branch
      %47 = sbr.rel (%p45) target = $region25
    $region24: #{tpu_custom_call.1} parent=1 // pred_region
      %vm48 = vcmask 0
      %49 = vst.msk [vmem:[#allocation3] sm:$0x1] %vm48, -inf
      %50 = vst.msk [vmem:[#allocation4] sm:$0x1] %vm48, 0.0
      %vm51 = vcmask 253952
      %52 = vst.msk [vmem:[#allocation2] sm:$0x1] %vm51, 0.0
    $region25: #{tpu_custom_call.1} parent=1 // pred_fallthru
      _
    %v53 = vld [vmem:[%s42] sm:$0xff]
    %v54 = vld [vmem:[%s1] sm:$0xff]
    %v55 = vld [vmem:[%s1 + $0x8] sm:$0xff]
    %v56 = vld [vmem:[%s1 + $0x10] sm:$0xff]
    %v57 = vld [vmem:[%s1 + $0x18] sm:$0xff]
    %v58 = vld [vmem:[%s2] sm:$0x1]
    %v60 = vlaneseq
    %v61 = vshrl.u32 %v60, 7
    %v62 = vsub.s32 0, %v61
    %v63 = vrot.slane %v58, %v62
    %vm65 = vcmask 261120
    %v67 = vsel %vm65, %v53, 0
    %69 = vmatprep.subr.mxu0 0.0
    %70 = vmatpush1.msra.mxu0 0.0
    %71 = vmatprep.subr.mxu0 0.0
    %72 = vmatpush1.msra.mxu0 0.0
    %73 = vmatprep.subr.mxu0 0.0
    %74 = vmatpush1.msra.mxu0 0.0
    %75 = vmatprep.subr.mxu0 0.0
    %76 = vmatpush1.msra.mxu0 0.0
    %77 = vmatprep.subr.mxu0 0.0
    %78 = vmatpush1.msra.mxu0 0.0
    %79 = vmatprep.subr.mxu0 0.0
    %80 = vmatpush1.msra.mxu0 0.0
    %81 = vmatprep.subr.mxu0 0.0
    %82 = vmatpush1.msra.mxu0 0.0
    %83 = vmatprep.subr.mxu0 0.0
    %84 = vmatpush1.msra.mxu0 0.0
    %85 = vmatprep.subr.mxu0 0.0
    %86 = vmatpush1.msra.mxu0 0.0
    %87 = vmatprep.subr.mxu0 0.0
    %88 = vmatpush1.msra.mxu0 0.0
    %89 = vmatprep.subr.mxu0 0.0
    %90 = vmatpush1.msra.mxu0 0.0
    %91 = vmatprep.subr.mxu0 0.0
    %92 = vmatpush1.msra.mxu0 0.0
    %93 = vmatprep.subr.mxu0 0.0
    %94 = vmatpush1.msra.mxu0 %v57
    %95 = vmatprep.subr.mxu0 0.0
    %96 = vmatpush1.msra.mxu0 %v56
    %97 = vmatprep.subr.mxu0 0.0
    %98 = vmatpush1.msra.mxu0 %v55
    %99 = vmatprep.subr.mxu0 0.0
    %100 = vmatpush1.msra.mxu0 %v54
    %101 = vmatprep.subr.mxu0 0.0
    %102 = vmatpush2.msra.mxu0 0.0
    %103 = vmatprep.subr.mxu0 0.0
    %104 = vmatpush2.msra.mxu0 0.0
    %105 = vmatprep.subr.mxu0 0.0
    %106 = vmatpush2.msra.mxu0 0.0
    %107 = vmatprep.subr.mxu0 0.0
    %108 = vmatpush2.msra.mxu0 0.0
    %109 = vmatprep.subr.mxu0 0.0
    %110 = vmatpush2.msra.mxu0 0.0
    %111 = vmatprep.subr.mxu0 0.0
    %112 = vmatpush2.msra.mxu0 0.0
    %113 = vmatprep.subr.mxu0 0.0
    %114 = vmatpush2.msra.mxu0 0.0
    %115 = vmatprep.subr.mxu0 0.0
    %116 = vmatpush2.msra.mxu0 0.0
    %117 = vmatprep.subr.mxu0 0.0
    %118 = vmatpush2.msra.mxu0 0.0
    %119 = vmatprep.subr.mxu0 0.0
    %120 = vmatpush2.msra.mxu0 0.0
    %121 = vmatprep.subr.mxu0 0.0
    %122 = vmatpush2.msra.mxu0 0.0
    %123 = vmatprep.subr.mxu0 0.0
    %124 = vmatpush2.msra.mxu0 0.0
    %125 = vmatprep.subr.mxu0 0.0
    %126 = vmatpush2.msra.mxu0 0.0
    %127 = vmatprep.subr.mxu0 0.0
    %128 = vmatpush2.msra.mxu0 0.0
    %129 = vmatprep.subr.mxu0 0.0
    %130 = vmatpush2.msra.mxu0 0.0
    %131 = vmatprep.subr.mxu0 0.0
    %132 = vmatpush2.msra.mxu0 0.0
    %133 = vmatprep.mubr.f32.mxu0 0.0
    %134 = vmatmul.mubr.f32.gmra.mxu0 %v67
    %v135 = vpop.f32.mrf.mxu0
    %v136 = vadd.f32 %v63, %v135
    %v137 = vpop.f32.mrf.mxu0
    %138 = vdwg.mxu0
    %v139 = vxor.u32 %v136, 2147483648
    %v140 = vmul.f32 %v139, 1.442695
    %v141 = vpow.pop %v140
    %v142 = vadd.f32 %v141, 1.0
    %v143 = vrcp.pop %v142
    %v144 = vmul.f32 1.0, %v143
    %v145 = vld [vmem:[%s3] sm:$0xff]
    %v146 = vld [vmem:[%s3 + $0x8] sm:$0xff]
    %v147 = vld [vmem:[#allocation5] sm:$0x1]
    %v149 = vlaneseq
    %v150 = vshrl.u32 %v149, 7
    %v151 = vsub.s32 0, %v150
    %v152 = vrot.slane %v147, %v151
    %vm154 = vcmask 130048
    %v156 = vsel %vm154, %v144, 0
    %158 = vmatprep.subr.mxu0 0.0
    %159 = vmatpush1.msra.mxu0 0.0
    %160 = vmatprep.subr.mxu0 0.0
    %161 = vmatpush1.msra.mxu0 0.0
    %162 = vmatprep.subr.mxu0 0.0
    %163 = vmatpush1.msra.mxu0 0.0
    %164 = vmatprep.subr.mxu0 0.0
    %165 = vmatpush1.msra.mxu0 0.0
    %166 = vmatprep.subr.mxu0 0.0
    %167 = vmatpush1.msra.mxu0 0.0
    %168 = vmatprep.subr.mxu0 0.0
    %169 = vmatpush1.msra.mxu0 0.0
    %170 = vmatprep.subr.mxu0 0.0
    %171 = vmatpush1.msra.mxu0 0.0
    %172 = vmatprep.subr.mxu0 0.0
    %173 = vmatpush1.msra.mxu0 0.0
    %174 = vmatprep.subr.mxu0 0.0
    %175 = vmatpush1.msra.mxu0 0.0
    %176 = vmatprep.subr.mxu0 0.0
    %177 = vmatpush1.msra.mxu0 0.0
    %178 = vmatprep.subr.mxu0 0.0
    %179 = vmatpush1.msra.mxu0 0.0
    %180 = vmatprep.subr.mxu0 0.0
    %181 = vmatpush1.msra.mxu0 0.0
    %182 = vmatprep.subr.mxu0 0.0
    %183 = vmatpush1.msra.mxu0 0.0
    %184 = vmatprep.subr.mxu0 0.0
    %185 = vmatpush1.msra.mxu0 0.0
    %186 = vmatprep.subr.mxu0 0.0
    %187 = vmatpush1.msra.mxu0 %v146
    %188 = vmatprep.subr.mxu0 0.0
    %189 = vmatpush1.msra.mxu0 %v145
    %190 = vmatprep.subr.mxu0 0.0
    %191 = vmatpush2.msra.mxu0 0.0
    %192 = vmatprep.subr.mxu0 0.0
    %193 = vmatpush2.msra.mxu0 0.0
    %194 = vmatprep.subr.mxu0 0.0
    %195 = vmatpush2.msra.mxu0 0.0
    %196 = vmatprep.subr.mxu0 0.0
    %197 = vmatpush2.msra.mxu0 0.0
    %198 = vmatprep.subr.mxu0 0.0
    %199 = vmatpush2.msra.mxu0 0.0
    %200 = vmatprep.subr.mxu0 0.0
    %201 = vmatpush2.msra.mxu0 0.0
    %202 = vmatprep.subr.mxu0 0.0
    %203 = vmatpush2.msra.mxu0 0.0
    %204 = vmatprep.subr.mxu0 0.0
    %205 = vmatpush2.msra.mxu0 0.0
    %206 = vmatprep.subr.mxu0 0.0
    %207 = vmatpush2.msra.mxu0 0.0
    %208 = vmatprep.subr.mxu0 0.0
    %209 = vmatpush2.msra.mxu0 0.0
    %210 = vmatprep.subr.mxu0 0.0
    %211 = vmatpush2.msra.mxu0 0.0
    %212 = vmatprep.subr.mxu0 0.0
    %213 = vmatpush2.msra.mxu0 0.0
    %214 = vmatprep.subr.mxu0 0.0
    %215 = vmatpush2.msra.mxu0 0.0
    %216 = vmatprep.subr.mxu0 0.0
    %217 = vmatpush2.msra.mxu0 0.0
    %218 = vmatprep.subr.mxu0 0.0
    %219 = vmatpush2.msra.mxu0 0.0
    %220 = vmatprep.subr.mxu0 0.0
    %221 = vmatpush2.msra.mxu0 0.0
    %222 = vmatprep.mubr.f32.mxu0 0.0
    %223 = vmatmul.mubr.f32.gmra.mxu0 %v156
    %v224 = vpop.f32.mrf.mxu0
    %v225 = vadd.f32 %v152, %v224
    %v226 = vpop.f32.mrf.mxu0
    %227 = vdwg.mxu0
    %v228 = vld [vmem:[#allocation3] sm:$0x1]
    %vm229 = vcmask 7168
    %v230 = vsel %vm229, %v225, -inf
    %v231 = vrot.slane %v230, 4
    %v232 = vmax.f32 %v230, %v231
    %v233 = vrot.slane %v232, 2
    %v234 = vmax.f32 %v232, %v233
    %v235 = vrot.slane %v234, 1
    %v236 = vmax.f32 %v234, %v235
    %v237 = vmax.f32 %v228, %v236
    %vm238 = vcmp.eq.f32.partialorder %v237, -inf
    %v239 = vsel %vm238, 0.0, %v237
    %v240 = vsub.f32 %v228, %v239
    %v241 = vmul.f32 %v240, 1.442695
    %v242 = vpow.pop %v241
    %v244 = vlaneseq
    %v245 = vshrl.u32 %v244, 7
    %v246 = vsub.s32 0, %v245
    %v247 = vrot.slane %v239, %v246
    %v249 = vsub.f32 %v225, %v247
    %v250 = vmul.f32 %v249, 1.442695
    %v251 = vpow.pop %v250
    %v252 = vld [vmem:[#allocation4] sm:$0x1]
    %v253 = vmul.f32 %v242, %v252
    %v254 = vsel %vm229, %v251, 0.0
    %v255 = vrot.slane %v254, 4
    %v256 = vadd.f32 %v254, %v255
    %v257 = vrot.slane %v256, 2
    %v258 = vadd.f32 %v256, %v257
    %v259 = vrot.slane %v258, 1
    %v260 = vadd.f32 %v258, %v259
    %v261 = vadd.f32 %v253, %v260
    %vm262 = vcmask 0
    %263 = vst.msk [vmem:[#allocation4] sm:$0x1] %vm262, %v261
    %264 = vst.msk [vmem:[#allocation3] sm:$0x1] %vm262, %v237
    %265 = vxpose.xlu0.b32.start [1/16] %v251, 128
    %266 = vxpose.xlu0.b32.cont [2/16] 0.0, 128
    %267 = vxpose.xlu0.b32.cont [3/16] 0.0, 128
    %268 = vxpose.xlu0.b32.cont [4/16] 0.0, 128
    %269 = vxpose.xlu0.b32.cont [5/16] 0.0, 128
    %270 = vxpose.xlu0.b32.cont [6/16] 0.0, 128
    %271 = vxpose.xlu0.b32.cont [7/16] 0.0, 128
    %272 = vxpose.xlu0.b32.cont [8/16] 0.0, 128
    %273 = vxpose.xlu0.b32.cont [9/16] 0.0, 128
    %274 = vxpose.xlu0.b32.cont [10/16] 0.0, 128
    %275 = vxpose.xlu0.b32.cont [11/16] 0.0, 128
    %276 = vxpose.xlu0.b32.cont [12/16] 0.0, 128
    %277 = vxpose.xlu0.b32.cont [13/16] 0.0, 128
    %278 = vxpose.xlu0.b32.cont [14/16] 0.0, 128
    %279 = vxpose.xlu0.b32.cont [15/16] 0.0, 128
    %280 = vxpose.xlu0.b32.end [16/16] 0.0, 128
    %v281 = vpop.trf.xlu0
    %v282 = vpop.trf.xlu0
    %v283 = vpop.trf.xlu0
    %v284 = vpop.trf.xlu0
    %v285 = vpop.trf.xlu0
    %v286 = vpop.trf.xlu0
    %v287 = vpop.trf.xlu0
    %v288 = vpop.trf.xlu0
    %v289 = vpop.trf.xlu0
    %v290 = vpop.trf.xlu0
    %v291 = vpop.trf.xlu0
    %v292 = vpop.trf.xlu0
    %v293 = vpop.trf.xlu0
    %v294 = vpop.trf.xlu0
    %v295 = vpop.trf.xlu0
    %v296 = vpop.trf.xlu0
    %vm297 = vcmask 64512
    %v299 = vsel %vm297, %v281, 0
    %301 = vmatprep.subr.mxu0 0.0
    %302 = vmatpush1.msra.mxu0 0.0
    %303 = vmatprep.subr.mxu0 0.0
    %304 = vmatpush1.msra.mxu0 0.0
    %305 = vmatprep.subr.mxu0 0.0
    %306 = vmatpush1.msra.mxu0 0.0
    %307 = vmatprep.subr.mxu0 0.0
    %308 = vmatpush1.msra.mxu0 0.0
    %309 = vmatprep.subr.mxu0 0.0
    %310 = vmatpush1.msra.mxu0 0.0
    %311 = vmatprep.subr.mxu0 0.0
    %312 = vmatpush1.msra.mxu0 0.0
    %313 = vmatprep.subr.mxu0 0.0
    %314 = vmatpush1.msra.mxu0 0.0
    %315 = vmatprep.subr.mxu0 0.0
    %316 = vmatpush1.msra.mxu0 0.0
    %317 = vmatprep.subr.mxu0 0.0
    %318 = vmatpush1.msra.mxu0 0.0
    %319 = vmatprep.subr.mxu0 0.0
    %320 = vmatpush1.msra.mxu0 0.0
    %321 = vmatprep.subr.mxu0 0.0
    %322 = vmatpush1.msra.mxu0 0.0
    %323 = vmatprep.subr.mxu0 0.0
    %324 = vmatpush1.msra.mxu0 0.0
    %325 = vmatprep.subr.mxu0 0.0
    %326 = vmatpush1.msra.mxu0 0.0
    %327 = vmatprep.subr.mxu0 0.0
    %328 = vmatpush1.msra.mxu0 0.0
    %329 = vmatprep.subr.mxu0 0.0
    %330 = vmatpush1.msra.mxu0 0.0
    %331 = vmatprep.subr.mxu0 0.0
    %332 = vmatpush1.msra.mxu0 %v53
    %333 = vmatprep.subr.mxu0 0.0
    %334 = vmatpush2.msra.mxu0 0.0
    %335 = vmatprep.subr.mxu0 0.0
    %336 = vmatpush2.msra.mxu0 0.0
    %337 = vmatprep.subr.mxu0 0.0
    %338 = vmatpush2.msra.mxu0 0.0
    %339 = vmatprep.subr.mxu0 0.0
    %340 = vmatpush2.msra.mxu0 0.0
    %341 = vmatprep.subr.mxu0 0.0
    %342 = vmatpush2.msra.mxu0 0.0
    %343 = vmatprep.subr.mxu0 0.0
    %344 = vmatpush2.msra.mxu0 0.0
    %345 = vmatprep.subr.mxu0 0.0
    %346 = vmatpush2.msra.mxu0 0.0
    %347 = vmatprep.subr.mxu0 0.0
    %348 = vmatpush2.msra.mxu0 0.0
    %349 = vmatprep.subr.mxu0 0.0
    %350 = vmatpush2.msra.mxu0 0.0
    %351 = vmatprep.subr.mxu0 0.0
    %352 = vmatpush2.msra.mxu0 0.0
    %353 = vmatprep.subr.mxu0 0.0
    %354 = vmatpush2.msra.mxu0 0.0
    %355 = vmatprep.subr.mxu0 0.0
    %356 = vmatpush2.msra.mxu0 0.0
    %357 = vmatprep.subr.mxu0 0.0
    %358 = vmatpush2.msra.mxu0 0.0
    %359 = vmatprep.subr.mxu0 0.0
    %360 = vmatpush2.msra.mxu0 0.0
    %361 = vmatprep.subr.mxu0 0.0
    %362 = vmatpush2.msra.mxu0 0.0
    %363 = vmatprep.subr.mxu0 0.0
    %364 = vmatpush2.msra.mxu0 0.0
    %365 = vmatprep.mubr.f32.mxu0 0.0
    %366 = vmatmul.mubr.f32.gmra.mxu0 %v299
    %v367 = vpop.f32.mrf.mxu0
    %v368 = vadd.f32 0.0, %v367
    %v369 = vpop.f32.mrf.mxu0
    %370 = vdwg.mxu0
    %v371 = vld [vmem:[#allocation2] sm:$0x1]
    %373 = vset.pattern.permute.xlu0 0
    %374 = vperm.xlu0 %373, %v242
    %v375 = vpop.permute.xlu0 %374
    %v377 = vlaneseq
    %v378 = vshrl.u32 %v377, 7
    %v379 = vsub.s32 0, %v378
    %v380 = vrot.slane %v375, %v379
    %v381 = vmul.f32 %v380, %v371
    %v382 = vadd.f32 %v381, %v368
    %vm383 = vcmask 253952
    %384 = vst.msk [vmem:[#allocation2] sm:$0x1] %vm383, %v382
    // Predicated region
    $region26: #{tpu_custom_call.1} parent=1 // pred_check
      %p385 = pneg %p44
    $region27: #{tpu_custom_call.1} parent=1 // pred_check_branch
      %387 = sbr.rel (%p385) target = $region29
    $region28: #{tpu_custom_call.1} parent=1 // pred_region
      %v388 = vld [vmem:[#allocation2] sm:$0x1]
      %389 = vst.msk [vmem:[#allocation6] sm:$0x1] %vm383, %v388
      %v390 = vld [vmem:[#allocation3] sm:$0x1]
      %391 = vst.msk [vmem:[#allocation8] sm:$0x1] %vm262, %v390
      %v392 = vld [vmem:[#allocation4] sm:$0x1]
      %393 = vst.msk [vmem:[#allocation10] sm:$0x1] %vm262, %v392
    $region29: #{tpu_custom_call.1} parent=1 // pred_fallthru
      _
    // Predicated region
    $region30: #{tpu_custom_call.1} parent=1 // pred_check
      _
    $region31: #{tpu_custom_call.1} parent=1 // pred_check_branch
      %395 = sbr.rel (0) target = $region33
    $region32: #{tpu_custom_call.1} parent=1 // pred_region
      %s397 = ssub.s32 16, 16
      %398 = vsyncadd [#allocation7], %s397
      %s400 = sshll.u32 [#allocation6], 4
      %s401 = int_to_ptr.vmem [resolvable:$true] %s400
      %403 = dma.vmem_to_hbm [thread:$0]  %s401, 16, %s5, [#allocation7]
    $region33: #{tpu_custom_call.1} parent=1 // pred_fallthru
      _
    // Predicated region
    $region34: #{tpu_custom_call.1} parent=1 // pred_check
      _
    $region35: #{tpu_custom_call.1} parent=1 // pred_check_branch
      %405 = sbr.rel (0) target = $region37
    $region36: #{tpu_custom_call.1} parent=1 // pred_region
      %s407 = ssub.s32 16, 16
      %408 = vsyncadd [#allocation9], %s407
      %s410 = sshll.u32 [#allocation8], 4
      %s411 = int_to_ptr.vmem [resolvable:$true] %s410
      %413 = dma.vmem_to_hbm [thread:$0]  %s411, 16, %s6, [#allocation9]
    $region37: #{tpu_custom_call.1} parent=1 // pred_fallthru
      _
    // Predicated region
    $region38: #{tpu_custom_call.1} parent=1 // pred_check
      _
    $region39: #{tpu_custom_call.1} parent=1 // pred_check_branch
      %415 = sbr.rel (0) target = $region41
    $region40: #{tpu_custom_call.1} parent=1 // pred_region
      %s417 = ssub.s32 16, 16
      %418 = vsyncadd [#allocation9], %s417
      %s420 = sshll.u32 [#allocation10], 4
      %s421 = int_to_ptr.vmem [resolvable:$true] %s420
      %423 = dma.vmem_to_hbm [thread:$0]  %s421, 16, %s7, [#allocation9]
    $region41: #{tpu_custom_call.1} parent=1 // pred_fallthru
      _
    // Predicated region
    $region42: #{tpu_custom_call.1} parent=1 // pred_check
      _
    $region43: #{tpu_custom_call.1} parent=1 // pred_check_branch
      %425 = sbr.rel (0) target = $region45
    $region44: #{tpu_custom_call.1} parent=1 // pred_region
      %426 = dma.done [#allocation7], 16
    $region45: #{tpu_custom_call.1} parent=1 // pred_fallthru
      _
    // Predicated region
    $region46: #{tpu_custom_call.1} parent=1 // pred_check
      _
    $region47: #{tpu_custom_call.1} parent=1 // pred_check_branch
      %428 = sbr.rel (0) target = $region49
    $region48: #{tpu_custom_call.1} parent=1 // pred_region
      %429 = dma.done [#allocation9], 16
    $region49: #{tpu_custom_call.1} parent=1 // pred_fallthru
      _
    // Predicated region
    $region50: #{tpu_custom_call.1} parent=1 // pred_check
      _
    $region51: #{tpu_custom_call.1} parent=1 // pred_check_branch
      %431 = sbr.rel (0) target = $region53
    $region52: #{tpu_custom_call.1} parent=1 // pred_region
      %432 = dma.done [#allocation9], 16
    $region53: #{tpu_custom_call.1} parent=1 // pred_fallthru
      _
    %433 = vsyncpa [#allocation7], 1
    %434 = vsyncpa [#allocation9], 1

</llo_original>
